<compile_context>
chip_gen: v5e
topology: v5e:2x2
jax: 0.10.0
libtpu: 0.0.40
codegen_flags: <defaults>
</compile_context>

<pallas_src>
import functools

import jax
import jax.numpy as jnp
from jax.experimental import pallas as pl
from jax.experimental.pallas import tpu as pltpu


def _round_up(x, m):
    return (x + m - 1) // m * m


def bert_output_kernel(h_ref, w_ref, inp_ref, p_ref, o_ref, *, eps, mm_dtype):
    # Dense: whole-K contraction against the VMEM-resident weight.  Activations are cast to the
    # matmul dtype in-kernel (saves a separate wrapper HBM pass); f32 accumulation on the MXU.
    acc = jnp.dot(h_ref[...].astype(mm_dtype), w_ref[...],
                  preferred_element_type=jnp.float32)

    params = p_ref[...]                                  # (3, H) f32
    bias, gamma, beta = params[0:1, :], params[1:2, :], params[2:3, :]

    # Dropout is identity in eval mode.
    # TODO(synk): training-mode dropout (pltpu.prng_random_bits mask before the residual add)
    # is not implemented.
    x = acc + bias + inp_ref[...].astype(jnp.float32)

    # LayerNorm over the hidden (last) axis: f32 math, population variance, eps inside rsqrt
    # (matches BertLayerNorm).
    mean = jnp.mean(x, axis=-1, keepdims=True)
    centered = x - mean
    var = jnp.mean(centered * centered, axis=-1, keepdims=True)
    y = centered * jax.lax.rsqrt(var + eps) * gamma + beta
    o_ref[...] = y.astype(o_ref.dtype)


def bert_output(hidden_states, input_tensor, weight, bias, gamma, beta, *,
                eps=1e-12, tm=512, out_dtype=None, use_bf16_matmul=True,
                vmem_cap_bytes=48 << 20):
    """hidden_states: [B, S, I], input_tensor: [B, S, H] -> [B, S, H].

    out_dtype defaults to input_tensor.dtype; pass bf16 residual/out_dtype in a bf16 model to
    halve the residual-read and output-writeback traffic.
    """
    B, S, I = hidden_states.shape
    H = input_tensor.shape[-1]
    M = B * S
    out_dtype = input_tensor.dtype if out_dtype is None else out_dtype

    mm_dtype = jnp.bfloat16 if use_bf16_matmul else hidden_states.dtype

    # Weight cast happens once per distinct weight value; in a real model store/cache the bf16
    # weight so this does not recur per forward call.
    w2d = weight if weight.dtype == mm_dtype else weight.astype(mm_dtype)

    h2d = hidden_states.reshape(M, I)     # no wrapper-side cast/pad pass over the [M, I] stream
    inp2d = input_tensor.reshape(M, H)

    # Row tile: large (mem-bound kernel), multiple of 8 sublanes.
    tm = min(tm, _round_up(M, 8))
    Mp = _round_up(M, tm)
    mt = Mp // tm
    # v7x megacore balance: prefer an even number of row tiles when there is enough work.
    if mt > 1 and mt % 2 == 1 and tm >= 512:
        tm //= 2
        Mp = _round_up(M, tm)
        mt = Mp // tm

    act_isz = jnp.dtype(h2d.dtype).itemsize
    inp_isz = jnp.dtype(inp2d.dtype).itemsize
    w_isz = jnp.dtype(mm_dtype).itemsize
    out_isz = jnp.dtype(out_dtype).itemsize

    def footprint(tm_):
        return (2 * tm_ * I * act_isz      # activation tiles (double-buffered)
                + 2 * I * H * w_isz        # resident weight (constant block index)
                + 2 * tm_ * H * inp_isz    # residual tiles
                + 2 * tm_ * H * out_isz    # output tiles
                + 2 * 8 * H * 4)           # packed bias/gamma/beta (padded to 8 sublanes)

    # Shrink the row tile if the double-buffered footprint would bust the VMEM cap
    # (v7x: 64 MiB per TensorCore; leave headroom for Mosaic internal scratch).
    while tm > 256 and tm % 2 == 0 and footprint(tm) > vmem_cap_bytes:
        tm //= 2
        Mp = _round_up(M, tm)
        mt = Mp // tm
    vmem_bytes = int(footprint(tm) + (2 << 20))

    # Pad rows only when actually ragged (typical BERT shapes need no padding).
    if Mp != M:
        h2d = jnp.pad(h2d, ((0, Mp - M), (0, 0)))
        inp2d = jnp.pad(inp2d, ((0, Mp - M), (0, 0)))

    # Pack LayerNorm/bias params into a single (3, H) f32 block (one DMA descriptor).
    params = jnp.stack([bias, gamma, beta]).astype(jnp.float32)

    cost = pl.CostEstimate(
        flops=2 * Mp * I * H + 10 * Mp * H,
        transcendentals=Mp,
        bytes_accessed=(Mp * I * act_isz        # activation stream
                        + I * H * w_isz         # weight read once
                        + Mp * H * inp_isz      # residual stream
                        + Mp * H * out_isz      # output writeback
                        + 3 * H * 4),
    )

    kernel = functools.partial(bert_output_kernel, eps=eps, mm_dtype=mm_dtype)

    out2d = pl.pallas_call(
        kernel,
        out_shape=jax.ShapeDtypeStruct((Mp, H), out_dtype),
        grid_spec=pltpu.PrefetchScalarGridSpec(
            num_scalar_prefetch=0,
            grid=(mt,),
            in_specs=[
                pl.BlockSpec((tm, I), lambda i: (i, 0)),   # activations (streamed per row tile)
                pl.BlockSpec((I, H), lambda i: (0, 0)),    # dense weight (VMEM-resident)
                pl.BlockSpec((tm, H), lambda i: (i, 0)),   # residual
                pl.BlockSpec((3, H), lambda i: (0, 0)),    # packed bias / gamma / beta (f32)
            ],
            out_specs=pl.BlockSpec((tm, H), lambda i: (i, 0)),
        ),
        compiler_params=pltpu.CompilerParams(
            dimension_semantics=("parallel",),
            vmem_limit_bytes=vmem_bytes),
        cost_estimate=cost,
    )(h2d, w2d, inp2d, params)

    return out2d[:M].reshape(B, S, H)


if __name__ == "__main__":
    # Small config: hidden_size=128, intermediate_size=512, batch=2, seq=8.
    B, S, H, I = 2, 8, 128, 512
    eps = 1e-12

    key = jax.random.PRNGKey(0)
    k_h, k_in, k_w, k_b, k_g, k_be = jax.random.split(key, 6)

    hidden_states = jax.random.normal(k_h, (B, S, I), dtype=jnp.float32)
    input_tensor = jax.random.normal(k_in, (B, S, H), dtype=jnp.float32)

    # Deterministic parameter init (nn.Linear-like scale; LayerNorm gamma~1, beta~0).
    weight = jax.random.normal(k_w, (I, H), dtype=jnp.float32) * (1.0 / jnp.sqrt(I))
    bias = jax.random.normal(k_b, (H,), dtype=jnp.float32) * 0.01
    gamma = 1.0 + 0.01 * jax.random.normal(k_g, (H,), dtype=jnp.float32)
    beta = 0.01 * jax.random.normal(k_be, (H,), dtype=jnp.float32)

    out = bert_output(hidden_states, input_tensor, weight, bias, gamma, beta, eps=eps)
    out = jax.block_until_ready(out)

    # Pure-JAX reference (matching the kernel's bf16 matmul operands, f32 accumulation/LN).
    h_bf = hidden_states.astype(jnp.bfloat16).astype(jnp.float32).reshape(-1, I)
    w_bf = weight.astype(jnp.bfloat16).astype(jnp.float32)
    x = h_bf @ w_bf + bias
    x = x + input_tensor.reshape(-1, H)
    mean = x.mean(-1, keepdims=True)
    var = ((x - mean) ** 2).mean(-1, keepdims=True)
    ref = ((x - mean) * jax.lax.rsqrt(var + eps)) * gamma + beta
    ref = ref.reshape(B, S, H)
    assert jnp.allclose(out, ref, atol=2e-3, rtol=2e-3), "mismatch vs reference"

    print("KERNEL_OK")
</pallas_src>

<mosaic_0001>
module attributes {stable_mosaic.version = 11 : i64} {
  func.func @bert_output_kernel(%arg0: i32, %arg1: memref<16x512xf32, #tpu.memory_space<vmem>>, %arg2: memref<512x128xbf16, #tpu.memory_space<vmem>>, %arg3: memref<16x128xf32, #tpu.memory_space<vmem>>, %arg4: memref<3x128xf32, #tpu.memory_space<vmem>>, %arg5: memref<16x128xf32, #tpu.memory_space<vmem>>) attributes {dimension_semantics = [#tpu.dimension_semantics<parallel>], iteration_bounds = array<i64: 1>, scalar_prefetch = 0 : i64, scratch_operands = 0 : i64, tpu.core_type = #tpu.core_type<tc>, window_params = [{transform_indices = @transform_0, window_bounds = array<i64: 16, 512>}, {pipeline_mode = #tpu.pipeline_mode<synchronous>, transform_indices = @transform_1, window_bounds = array<i64: 512, 128>}, {transform_indices = @transform_2, window_bounds = array<i64: 16, 128>}, {pipeline_mode = #tpu.pipeline_mode<synchronous>, transform_indices = @transform_3, window_bounds = array<i64: 3, 128>}, {transform_indices = @transform_4, window_bounds = array<i64: 16, 128>}]} {
    %c0 = arith.constant 0 : index
    %c0_0 = arith.constant 0 : index
    %0 = vector.load %arg1[%c0, %c0_0] : memref<16x512xf32, #tpu.memory_space<vmem>>, vector<16x512xf32>
    %1 = arith.truncf %0 : vector<16x512xf32> to vector<16x512xbf16>
    %c0_1 = arith.constant 0 : index
    %c0_2 = arith.constant 0 : index
    %2 = vector.load %arg2[%c0_1, %c0_2] : memref<512x128xbf16, #tpu.memory_space<vmem>>, vector<512x128xbf16>
    %cst = arith.constant dense<0.000000e+00> : vector<16x128xf32>
    %3 = tpu.matmul %1, %2, %cst {dimension_numbers = #tpu.dot_dimension_numbers<[1], [0], [0], [1], [0, 0, 1, 1], [], []>} : vector<16x512xbf16>, vector<512x128xbf16>, vector<16x128xf32> -> vector<16x128xf32>
    %c0_3 = arith.constant 0 : index
    %c0_4 = arith.constant 0 : index
    %4 = vector.load %arg4[%c0_3, %c0_4] : memref<3x128xf32, #tpu.memory_space<vmem>>, vector<3x128xf32>
    %5 = vector.extract_strided_slice %4 {offsets = [0, 0], sizes = [1, 128], strides = [1, 1]} : vector<3x128xf32> to vector<1x128xf32>
    %6 = vector.extract_strided_slice %4 {offsets = [1, 0], sizes = [1, 128], strides = [1, 1]} : vector<3x128xf32> to vector<1x128xf32>
    %7 = vector.extract_strided_slice %4 {offsets = [2, 0], sizes = [1, 128], strides = [1, 1]} : vector<3x128xf32> to vector<1x128xf32>
    %8 = vector.broadcast %5 : vector<1x128xf32> to vector<16x128xf32>
    %9 = arith.addf %3, %8 : vector<16x128xf32>
    %c0_5 = arith.constant 0 : index
    %c0_6 = arith.constant 0 : index
    %10 = vector.load %arg3[%c0_5, %c0_6] : memref<16x128xf32, #tpu.memory_space<vmem>>, vector<16x128xf32>
    %11 = arith.addf %9, %10 : vector<16x128xf32>
    %cst_7 = arith.constant dense<0.000000e+00> : vector<16xf32>
    %12 = vector.multi_reduction <add>, %11, %cst_7 [1] : vector<16x128xf32> to vector<16xf32>
    %13 = vector.shape_cast %12 : vector<16xf32> to vector<16x1xf32>
    %cst_8 = arith.constant 1.280000e+02 : f32
    %14 = vector.broadcast %cst_8 : f32 to vector<16x1xf32>
    %15 = arith.divf %13, %14 : vector<16x1xf32>
    %16 = vector.broadcast %15 : vector<16x1xf32> to vector<16x128xf32>
    %17 = arith.subf %11, %16 : vector<16x128xf32>
    %18 = arith.mulf %17, %17 : vector<16x128xf32>
    %cst_9 = arith.constant dense<0.000000e+00> : vector<16xf32>
    %19 = vector.multi_reduction <add>, %18, %cst_9 [1] : vector<16x128xf32> to vector<16xf32>
    %20 = vector.shape_cast %19 : vector<16xf32> to vector<16x1xf32>
    %cst_10 = arith.constant 1.280000e+02 : f32
    %21 = vector.broadcast %cst_10 : f32 to vector<16x1xf32>
    %22 = arith.divf %20, %21 : vector<16x1xf32>
    %cst_11 = arith.constant 9.99999996E-13 : f32
    %23 = vector.broadcast %cst_11 : f32 to vector<16x1xf32>
    %24 = arith.addf %22, %23 : vector<16x1xf32>
    %25 = math.rsqrt %24 : vector<16x1xf32>
    %26 = vector.broadcast %25 : vector<16x1xf32> to vector<16x128xf32>
    %27 = arith.mulf %17, %26 : vector<16x128xf32>
    %28 = vector.broadcast %6 : vector<1x128xf32> to vector<16x128xf32>
    %29 = arith.mulf %27, %28 : vector<16x128xf32>
    %30 = vector.broadcast %7 : vector<1x128xf32> to vector<16x128xf32>
    %31 = arith.addf %29, %30 : vector<16x128xf32>
    %c0_12 = arith.constant 0 : index
    %c0_13 = arith.constant 0 : index
    %32 = vector.load %arg5[%c0_12, %c0_13] : memref<16x128xf32, #tpu.memory_space<vmem>>, vector<16x128xf32>
    tpu.vector_store %arg5[%c0_12, %c0_13], %31 {strides = array<i32>} : memref<16x128xf32, #tpu.memory_space<vmem>>, vector<16x128xf32>,
    return
  }
  func.func @transform_0(%arg0: i32) -> (i32, i32) {
    %c0_i32 = arith.constant 0 : i32
    %c0_i32_0 = arith.constant 0 : i32
    return %arg0, %c0_i32 : i32, i32
  }
  func.func @transform_1(%arg0: i32) -> (i32, i32) {
    %c0_i32 = arith.constant 0 : i32
    %c0_i32_0 = arith.constant 0 : i32
    %c0_i32_1 = arith.constant 0 : i32
    return %c0_i32, %c0_i32_0 : i32, i32
  }
  func.func @transform_2(%arg0: i32) -> (i32, i32) {
    %c0_i32 = arith.constant 0 : i32
    %c0_i32_0 = arith.constant 0 : i32
    return %arg0, %c0_i32 : i32, i32
  }
  func.func @transform_3(%arg0: i32) -> (i32, i32) {
    %c0_i32 = arith.constant 0 : i32
    %c0_i32_0 = arith.constant 0 : i32
    %c0_i32_1 = arith.constant 0 : i32
    return %c0_i32, %c0_i32_0 : i32, i32
  }
  func.func @transform_4(%arg0: i32) -> (i32, i32) {
    %c0_i32 = arith.constant 0 : i32
    %c0_i32_0 = arith.constant 0 : i32
    return %arg0, %c0_i32 : i32, i32
  }
}

</mosaic_0001>

<llo_original>
// kernel: tpu_custom_call.1
$region0: #{tpu_custom_call.1}
  #allocation0 [shape = 'u32[]', space=smem, size = 0x4, offset = 0x4, fixed_abs, tag = 'smem constant byte address 0x4 - core index']
  #allocation1 [shape = 'u32[72,128]{1,0:T(1,128)}', space=vmem, size = 0x9000, scoped, tag = 'internal scratch']
  %s0 = inlined_call_operand.hbm [shape: f32[16,512], index: 0, kind: input, shape index: {}]
  %s1 = inlined_call_operand.hbm [shape: bf16[512,128], index: 1, kind: input, shape index: {}]
  %s2 = inlined_call_operand.hbm [shape: f32[16,128], index: 2, kind: input, shape index: {}]
  %s3 = inlined_call_operand.hbm [shape: f32[3,128], index: 3, kind: input, shape index: {}]
  %s4 = inlined_call_operand.hbm [shape: f32[16,128], index: 4, kind: output, shape index: {}]
  %s5 = sld [smem:[#allocation0]]
  $region42: #{tpu_custom_call.1} parent=0
    _
  %s7 = ssub.s32 1, %s5
  %s8 = scalar_select 0, %s7, %s5
  $region1: #{tpu_custom_call.1} parent=0
    #allocation2 [shape = 'u8[32768]{0}', space=vmem, size = 0x8000, scoped, tag = 'input window, operand 0, single buffered']
    #allocation3 [shape = 's32[1]{0}', space=sflag, size = 0x4, scoped, tag = 'scoped memory for tpu_custom_call.1']
    #allocation4 [shape = 's32[1]{0}', space=sflag, size = 0x4, scoped, tag = 'scoped memory for tpu_custom_call.1']
    #allocation5 [shape = 'u8[131072]{0}', space=vmem, size = 0x20000, scoped, tag = 'input window, operand 1, single buffered']
    #allocation6 [shape = 's32[1]{0}', space=sflag, size = 0x4, scoped, tag = 'scoped memory for tpu_custom_call.1']
    #allocation7 [shape = 'u8[8192]{0}', space=vmem, size = 0x2000, scoped, tag = 'input window, operand 2, single buffered']
    #allocation8 [shape = 'u8[2048]{0}', space=vmem, size = 0x800, scoped, tag = 'input window, operand 3, single buffered']
    #allocation9 [shape = 's32[1]{0}', space=sflag, size = 0x4, scoped, tag = 'scoped memory for tpu_custom_call.1']
    #allocation10 [shape = 'u8[8192]{0}', space=vmem, size = 0x2000, scoped, tag = 'output window, operand 0, single buffered']
    %9 = vsyncpa [#allocation3], 0
    %10 = vsyncpa [#allocation6], 0
    %11 = vsyncpa [#allocation9], 0
    %12 = vsyncpa [#allocation4], 0
    // Predicated region
    $region2: #{tpu_custom_call.1} parent=1 // pred_check
      _
    $region3: #{tpu_custom_call.1} parent=1 // pred_check_branch
      %14 = sbr.rel (0) target = $region5
    $region4: #{tpu_custom_call.1} parent=1 // pred_region
      %16 = vsyncadd [#allocation3], 0
      %s17 = sshll.u32 %s0, 4
      %s18 = int_to_ptr.hbm [resolvable:$true] %s17
      %s19 = sshll.u32 [#allocation2], 4
      %s20 = int_to_ptr.vmem [resolvable:$true] %s19
      %25 = dma.hbm_to_vmem [thread:$0]  %s18, 1024, %s20, [#allocation3], 512, 512, 32
    $region5: #{tpu_custom_call.1} parent=1 // pred_fallthru
      _
    // Predicated region
    $region6: #{tpu_custom_call.1} parent=1 // pred_check
      _
    $region7: #{tpu_custom_call.1} parent=1 // pred_check_branch
      %27 = sbr.rel (0) target = $region9
    $region8: #{tpu_custom_call.1} parent=1 // pred_region
      %29 = vsyncadd [#allocation6], 0
      %s30 = sshll.u32 %s1, 4
      %s31 = int_to_ptr.hbm [resolvable:$true] %s30
      %s32 = sshll.u32 [#allocation5], 4
      %s33 = int_to_ptr.vmem [resolvable:$true] %s32
      %38 = dma.hbm_to_vmem [thread:$0]  %s31, 4096, %s33, [#allocation6], 64, 64, 4
    $region9: #{tpu_custom_call.1} parent=1 // pred_fallthru
      _
    // Predicated region
    $region10: #{tpu_custom_call.1} parent=1 // pred_check
      _
    $region11: #{tpu_custom_call.1} parent=1 // pred_check_branch
      %40 = sbr.rel (0) target = $region13
    $region12: #{tpu_custom_call.1} parent=1 // pred_region
      %42 = vsyncadd [#allocation6], 0
      %s43 = sshll.u32 %s2, 4
      %s44 = int_to_ptr.hbm [resolvable:$true] %s43
      %s45 = sshll.u32 [#allocation7], 4
      %s46 = int_to_ptr.vmem [resolvable:$true] %s45
      %51 = dma.hbm_to_vmem [thread:$0]  %s44, 256, %s46, [#allocation6], 128, 128, 8
    $region13: #{tpu_custom_call.1} parent=1 // pred_fallthru
      _
    // Predicated region
    $region14: #{tpu_custom_call.1} parent=1 // pred_check
      _
    $region15: #{tpu_custom_call.1} parent=1 // pred_check_branch
      %53 = sbr.rel (0) target = $region17
    $region16: #{tpu_custom_call.1} parent=1 // pred_region
      %55 = vsyncadd [#allocation9], 0
      %s57 = sshll.u32 %s3, 4
      %s58 = int_to_ptr.hbm [resolvable:$true] %s57
      %s59 = sshll.u32 [#allocation8], 4
      %s60 = int_to_ptr.vmem [resolvable:$true] %s59
      %62 = dma.hbm_to_vmem [thread:$0]  %s58, 64, %s60, [#allocation9]
    $region17: #{tpu_custom_call.1} parent=1 // pred_fallthru
      _
    // Predicated region
    $region18: #{tpu_custom_call.1} parent=1 // pred_check
      _
    $region19: #{tpu_custom_call.1} parent=1 // pred_check_branch
      %64 = sbr.rel (0) target = $region21
    $region20: #{tpu_custom_call.1} parent=1 // pred_region
      %66 = dma.done [#allocation3], 1024
    $region21: #{tpu_custom_call.1} parent=1 // pred_fallthru
      _
    // Predicated region
    $region22: #{tpu_custom_call.1} parent=1 // pred_check
      _
    $region23: #{tpu_custom_call.1} parent=1 // pred_check_branch
      %68 = sbr.rel (0) target = $region25
    $region24: #{tpu_custom_call.1} parent=1 // pred_region
      %70 = dma.done [#allocation6], 4096
    $region25: #{tpu_custom_call.1} parent=1 // pred_fallthru
      _
    // Predicated region
    $region26: #{tpu_custom_call.1} parent=1 // pred_check
      _
    $region27: #{tpu_custom_call.1} parent=1 // pred_check_branch
      %72 = sbr.rel (0) target = $region29
    $region28: #{tpu_custom_call.1} parent=1 // pred_region
      %74 = dma.done [#allocation6], 256
    $region29: #{tpu_custom_call.1} parent=1 // pred_fallthru
      _
    // Predicated region
    $region30: #{tpu_custom_call.1} parent=1 // pred_check
      _
    $region31: #{tpu_custom_call.1} parent=1 // pred_check_branch
      %76 = sbr.rel (0) target = $region33
    $region32: #{tpu_custom_call.1} parent=1 // pred_region
      %78 = dma.done [#allocation9], 64
    $region33: #{tpu_custom_call.1} parent=1 // pred_fallthru
      _
    %v79 = vld [vmem:[#allocation2] sm:$0xff]
    %v80 = vld [vmem:[#allocation2 + $0x8] sm:$0xff]
    %v81 = vld [vmem:[#allocation2 + $0x10] sm:$0xff]
    %v82 = vld [vmem:[#allocation2 + $0x18] sm:$0xff]
    %v83 = vld [vmem:[#allocation2 + $0x20] sm:$0xff]
    %v84 = vld [vmem:[#allocation2 + $0x28] sm:$0xff]
    %v85 = vld [vmem:[#allocation2 + $0x30] sm:$0xff]
    %v86 = vld [vmem:[#allocation2 + $0x38] sm:$0xff]
    %v87 = vpack.c.bf16 %v83, %v79
    %v88 = vpack.c.bf16 %v84, %v80
    %v89 = vpack.c.bf16 %v85, %v81
    %v90 = vpack.c.bf16 %v86, %v82
    %v91 = vld [vmem:[#allocation5] sm:$0xf]
    %v92 = vld [vmem:[#allocation5 + $0x4] sm:$0xf]
    %v93 = vld [vmem:[#allocation5 + $0x8] sm:$0xf]
    %v94 = vld [vmem:[#allocation5 + $0xc] sm:$0xf]
    %v95 = vld [vmem:[#allocation5 + $0x10] sm:$0xf]
    %v96 = vld [vmem:[#allocation5 + $0x14] sm:$0xf]
    %v97 = vld [vmem:[#allocation5 + $0x18] sm:$0xf]
    %v98 = vld [vmem:[#allocation5 + $0x1c] sm:$0xf]
    %v99 = vld [vmem:[#allocation5 + $0x20] sm:$0xf]
    %v100 = vld [vmem:[#allocation5 + $0x24] sm:$0xf]
    %v101 = vld [vmem:[#allocation5 + $0x28] sm:$0xf]
    %v102 = vld [vmem:[#allocation5 + $0x2c] sm:$0xf]
    %v103 = vld [vmem:[#allocation5 + $0x30] sm:$0xf]
    %v104 = vld [vmem:[#allocation5 + $0x34] sm:$0xf]
    %v105 = vld [vmem:[#allocation5 + $0x38] sm:$0xf]
    %v106 = vld [vmem:[#allocation5 + $0x3c] sm:$0xf]
    %v107 = vld [vmem:[#allocation5 + $0x40] sm:$0xf]
    %v108 = vld [vmem:[#allocation5 + $0x44] sm:$0xf]
    %v109 = vld [vmem:[#allocation5 + $0x48] sm:$0xf]
    %v110 = vld [vmem:[#allocation5 + $0x4c] sm:$0xf]
    %v111 = vld [vmem:[#allocation5 + $0x50] sm:$0xf]
    %v112 = vld [vmem:[#allocation5 + $0x54] sm:$0xf]
    %v113 = vld [vmem:[#allocation5 + $0x58] sm:$0xf]
    %v114 = vld [vmem:[#allocation5 + $0x5c] sm:$0xf]
    %v115 = vld [vmem:[#allocation5 + $0x60] sm:$0xf]
    %v116 = vld [vmem:[#allocation5 + $0x64] sm:$0xf]
    %v117 = vld [vmem:[#allocation5 + $0x68] sm:$0xf]
    %v118 = vld [vmem:[#allocation5 + $0x6c] sm:$0xf]
    %v119 = vld [vmem:[#allocation5 + $0x70] sm:$0xf]
    %v120 = vld [vmem:[#allocation5 + $0x74] sm:$0xf]
    %v121 = vld [vmem:[#allocation5 + $0x78] sm:$0xf]
    %v122 = vld [vmem:[#allocation5 + $0x7c] sm:$0xf]
    %v123 = vld [vmem:[#allocation5 + $0x80] sm:$0xf]
    %v124 = vld [vmem:[#allocation5 + $0x84] sm:$0xf]
    %v125 = vld [vmem:[#allocation5 + $0x88] sm:$0xf]
    %v126 = vld [vmem:[#allocation5 + $0x8c] sm:$0xf]
    %v127 = vld [vmem:[#allocation5 + $0x90] sm:$0xf]
    %v128 = vld [vmem:[#allocation5 + $0x94] sm:$0xf]
    %v129 = vld [vmem:[#allocation5 + $0x98] sm:$0xf]
    %v130 = vld [vmem:[#allocation5 + $0x9c] sm:$0xf]
    %v131 = vld [vmem:[#allocation5 + $0xa0] sm:$0xf]
    %v132 = vld [vmem:[#allocation5 + $0xa4] sm:$0xf]
    %v133 = vld [vmem:[#allocation5 + $0xa8] sm:$0xf]
    %v134 = vld [vmem:[#allocation5 + $0xac] sm:$0xf]
    %v135 = vld [vmem:[#allocation5 + $0xb0] sm:$0xf]
    %v136 = vld [vmem:[#allocation5 + $0xb4] sm:$0xf]
    %v137 = vld [vmem:[#allocation5 + $0xb8] sm:$0xf]
    %v138 = vld [vmem:[#allocation5 + $0xbc] sm:$0xf]
    %v139 = vld [vmem:[#allocation5 + $0xc0] sm:$0xf]
    %v140 = vld [vmem:[#allocation5 + $0xc4] sm:$0xf]
    %v141 = vld [vmem:[#allocation5 + $0xc8] sm:$0xf]
    %v142 = vld [vmem:[#allocation5 + $0xcc] sm:$0xf]
    %v143 = vld [vmem:[#allocation5 + $0xd0] sm:$0xf]
    %v144 = vld [vmem:[#allocation5 + $0xd4] sm:$0xf]
    %v145 = vld [vmem:[#allocation5 + $0xd8] sm:$0xf]
    %v146 = vld [vmem:[#allocation5 + $0xdc] sm:$0xf]
    %v147 = vld [vmem:[#allocation5 + $0xe0] sm:$0xf]
    %v148 = vld [vmem:[#allocation5 + $0xe4] sm:$0xf]
    %v149 = vld [vmem:[#allocation5 + $0xe8] sm:$0xf]
    %v150 = vld [vmem:[#allocation5 + $0xec] sm:$0xf]
    %v151 = vld [vmem:[#allocation5 + $0xf0] sm:$0xf]
    %v152 = vld [vmem:[#allocation5 + $0xf4] sm:$0xf]
    %v153 = vld [vmem:[#allocation5 + $0xf8] sm:$0xf]
    %v154 = vld [vmem:[#allocation5 + $0xfc] sm:$0xf]
    %v155 = vld [vmem:[#allocation8] sm:$0x7]
    %v156 = vperm.slane %v155, 0
    %v221 = vunpack.c.l.b16 %v91
    %v222 = vunpack.c.l.b16 %v92
    %v223 = vunpack.c.l.b16 %v93
    %v224 = vunpack.c.l.b16 %v94
    %v225 = vunpack.c.l.b16 %v95
    %v226 = vunpack.c.l.b16 %v96
    %v227 = vunpack.c.l.b16 %v97
    %v228 = vunpack.c.l.b16 %v98
    %v229 = vunpack.c.l.b16 %v99
    %v230 = vunpack.c.l.b16 %v100
    %v231 = vunpack.c.l.b16 %v101
    %v232 = vunpack.c.l.b16 %v102
    %v233 = vunpack.c.l.b16 %v103
    %v234 = vunpack.c.l.b16 %v104
    %v235 = vunpack.c.l.b16 %v105
    %v236 = vunpack.c.l.b16 %v106
    %v237 = vunpack.c.l.b16 %v107
    %v238 = vunpack.c.l.b16 %v108
    %v239 = vunpack.c.l.b16 %v109
    %v240 = vunpack.c.l.b16 %v110
    %v241 = vunpack.c.l.b16 %v111
    %v242 = vunpack.c.l.b16 %v112
    %v243 = vunpack.c.l.b16 %v113
    %v244 = vunpack.c.l.b16 %v114
    %v245 = vunpack.c.l.b16 %v115
    %v246 = vunpack.c.l.b16 %v116
    %v247 = vunpack.c.l.b16 %v117
    %v248 = vunpack.c.l.b16 %v118
    %v249 = vunpack.c.l.b16 %v119
    %v250 = vunpack.c.l.b16 %v120
    %v251 = vunpack.c.l.b16 %v121
    %v252 = vunpack.c.l.b16 %v122
    %v253 = vunpack.c.l.b16 %v123
    %v254 = vunpack.c.l.b16 %v124
    %v255 = vunpack.c.l.b16 %v125
    %v256 = vunpack.c.l.b16 %v126
    %v257 = vunpack.c.l.b16 %v127
    %v258 = vunpack.c.l.b16 %v128
    %v259 = vunpack.c.l.b16 %v129
    %v260 = vunpack.c.l.b16 %v130
    %v261 = vunpack.c.l.b16 %v131
    %v262 = vunpack.c.l.b16 %v132
    %v263 = vunpack.c.l.b16 %v133
    %v264 = vunpack.c.l.b16 %v134
    %v265 = vunpack.c.l.b16 %v135
    %v266 = vunpack.c.l.b16 %v136
    %v267 = vunpack.c.l.b16 %v137
    %v268 = vunpack.c.l.b16 %v138
    %v269 = vunpack.c.l.b16 %v139
    %v270 = vunpack.c.l.b16 %v140
    %v271 = vunpack.c.l.b16 %v141
    %v272 = vunpack.c.l.b16 %v142
    %v273 = vunpack.c.l.b16 %v143
    %v274 = vunpack.c.l.b16 %v144
    %v275 = vunpack.c.l.b16 %v145
    %v276 = vunpack.c.l.b16 %v146
    %v277 = vunpack.c.l.b16 %v147
    %v278 = vunpack.c.l.b16 %v148
    %v279 = vunpack.c.l.b16 %v149
    %v280 = vunpack.c.l.b16 %v150
    %v281 = vunpack.c.l.b16 %v151
    %v282 = vunpack.c.l.b16 %v152
    %v283 = vunpack.c.l.b16 %v153
    %v284 = vunpack.c.l.b16 %v154
    %v285 = vpack.c.b16 %v222, %v221
    %v286 = vpack.c.b16 %v224, %v223
    %v287 = vpack.c.b16 %v226, %v225
    %v288 = vpack.c.b16 %v228, %v227
    %v289 = vpack.c.b16 %v230, %v229
    %v290 = vpack.c.b16 %v232, %v231
    %v291 = vpack.c.b16 %v234, %v233
    %v292 = vpack.c.b16 %v236, %v235
    %v293 = vpack.c.b16 %v238, %v237
    %v294 = vpack.c.b16 %v240, %v239
    %v295 = vpack.c.b16 %v242, %v241
    %v296 = vpack.c.b16 %v244, %v243
    %v297 = vpack.c.b16 %v246, %v245
    %v298 = vpack.c.b16 %v248, %v247
    %v299 = vpack.c.b16 %v250, %v249
    %v300 = vpack.c.b16 %v252, %v251
    %v301 = vpack.c.b16 %v254, %v253
    %v302 = vpack.c.b16 %v256, %v255
    %v303 = vpack.c.b16 %v258, %v257
    %v304 = vpack.c.b16 %v260, %v259
    %v305 = vpack.c.b16 %v262, %v261
    %v306 = vpack.c.b16 %v264, %v263
    %v307 = vpack.c.b16 %v266, %v265
    %v308 = vpack.c.b16 %v268, %v267
    %v309 = vpack.c.b16 %v270, %v269
    %v310 = vpack.c.b16 %v272, %v271
    %v311 = vpack.c.b16 %v274, %v273
    %v312 = vpack.c.b16 %v276, %v275
    %v313 = vpack.c.b16 %v278, %v277
    %v314 = vpack.c.b16 %v280, %v279
    %v315 = vpack.c.b16 %v282, %v281
    %v316 = vpack.c.b16 %v284, %v283
    %349 = vmatpush.bf16.msra.mxu0 %v292
    %350 = vmatpush.bf16.msra.mxu0 %v291
    %351 = vmatpush.bf16.msra.mxu0 %v290
    %352 = vmatpush.bf16.msra.mxu0 %v289
    %353 = vmatpush.bf16.msra.mxu0 %v288
    %354 = vmatpush.bf16.msra.mxu0 %v287
    %355 = vmatpush.bf16.msra.mxu0 %v286
    %356 = vmatpush.bf16.msra.mxu0 %v285
    %357 = vmatmul.bf16.gmra.mxu0 %v87
    %v358 = vpop.f32.mrf.mxu0
    %v359 = vadd.f32 %v156, %v358
    %v360 = vpop.f32.mrf.mxu0
    %v361 = vadd.f32 %v156, %v360
    %362 = vdwg.mxu0
    %363 = vmatpush.bf16.msra.mxu0 %v300
    %364 = vmatpush.bf16.msra.mxu0 %v299
    %365 = vmatpush.bf16.msra.mxu0 %v298
    %366 = vmatpush.bf16.msra.mxu0 %v297
    %367 = vmatpush.bf16.msra.mxu0 %v296
    %368 = vmatpush.bf16.msra.mxu0 %v295
    %369 = vmatpush.bf16.msra.mxu0 %v294
    %370 = vmatpush.bf16.msra.mxu0 %v293
    %371 = vmatmul.bf16.gmra.mxu0 %v88
    %v372 = vpop.f32.mrf.mxu0
    %v373 = vadd.f32 %v359, %v372
    %v374 = vpop.f32.mrf.mxu0
    %v375 = vadd.f32 %v361, %v374
    %376 = vdwg.mxu0
    %377 = vmatpush.bf16.msra.mxu0 %v308
    %378 = vmatpush.bf16.msra.mxu0 %v307
    %379 = vmatpush.bf16.msra.mxu0 %v306
    %380 = vmatpush.bf16.msra.mxu0 %v305
    %381 = vmatpush.bf16.msra.mxu0 %v304
    %382 = vmatpush.bf16.msra.mxu0 %v303
    %383 = vmatpush.bf16.msra.mxu0 %v302
    %384 = vmatpush.bf16.msra.mxu0 %v301
    %385 = vmatmul.bf16.gmra.mxu0 %v89
    %v386 = vpop.f32.mrf.mxu0
    %v387 = vadd.f32 %v373, %v386
    %v388 = vpop.f32.mrf.mxu0
    %v389 = vadd.f32 %v375, %v388
    %390 = vdwg.mxu0
    %391 = vmatpush.bf16.msra.mxu0 %v316
    %392 = vmatpush.bf16.msra.mxu0 %v315
    %393 = vmatpush.bf16.msra.mxu0 %v314
    %394 = vmatpush.bf16.msra.mxu0 %v313
    %395 = vmatpush.bf16.msra.mxu0 %v312
    %396 = vmatpush.bf16.msra.mxu0 %v311
    %397 = vmatpush.bf16.msra.mxu0 %v310
    %398 = vmatpush.bf16.msra.mxu0 %v309
    %399 = vmatmul.bf16.gmra.mxu0 %v90
    %v400 = vpop.f32.mrf.mxu0
    %v401 = vadd.f32 %v387, %v400
    %v402 = vpop.f32.mrf.mxu0
    %v403 = vadd.f32 %v389, %v402
    %404 = vdwg.mxu0
    %v405 = vld [vmem:[#allocation7] sm:$0xff]
    %v406 = vld [vmem:[#allocation7 + $0x8] sm:$0xff]
    %v407 = vadd.f32 %v401, %v405
    %v408 = vadd.f32 %v403, %v406
    %409 = vadd.xlane.f32.xlu0 %v407
    %v410 = vpop.xlane.xlu0 %409
    %411 = vadd.xlane.f32.xlu0 %v408
    %v412 = vpop.xlane.xlu0 %411
    %v413 = vrcp.pop 128.0
    %v414 = vmul.f32 128.0, %v413
    %v415 = vsub.f32 1.0, %v414
    %v416 = vmul.f32 %v413, %v415
    %v417 = vadd.f32 %v413, %v416
    %vm418 = vweird.f32 %v413
    %v419 = vsel %vm418, %v413, %v417
    %v420 = vmul.f32 %v410, %v419
    %v421 = vmul.f32 %v412, %v419
    %v422 = vsub.f32 %v407, %v420
    %v423 = vsub.f32 %v408, %v421
    %v424 = vmul.f32 %v422, %v422
    %v425 = vmul.f32 %v423, %v423
    %426 = vadd.xlane.f32.xlu0 %v424
    %v427 = vpop.xlane.xlu0 %426
    %428 = vadd.xlane.f32.xlu0 %v425
    %v429 = vpop.xlane.xlu0 %428
    %v430 = vmul.f32 %v427, %v419
    %v431 = vmul.f32 %v429, %v419
    %v432 = vadd.f32 %v430, 1e-12
    %v433 = vadd.f32 %v431, 1e-12
    %v434 = vrsqrt.pop %v432
    %v435 = vmul.f32 %v434, %v432
    %v436 = vmul.f32 %v435, %v434
    %v437 = vmul.f32 0.5, %v436
    %v438 = vsub.f32 1.5, %v437
    %v439 = vmul.f32 %v434, %v438
    %vm440 = vweird.f32 %v432
    %vm441 = vweird.f32 %v434
    %vm442 = vmor %vm440, %vm441
    %v443 = vsel %vm442, %v434, %v439
    %v444 = vrsqrt.pop %v433
    %v445 = vmul.f32 %v444, %v433
    %v446 = vmul.f32 %v445, %v444
    %v447 = vmul.f32 0.5, %v446
    %v448 = vsub.f32 1.5, %v447
    %v449 = vmul.f32 %v444, %v448
    %vm450 = vweird.f32 %v433
    %vm451 = vweird.f32 %v444
    %vm452 = vmor %vm450, %vm451
    %v453 = vsel %vm452, %v444, %v449
    %v454 = vmul.f32 %v422, %v443
    %v455 = vmul.f32 %v423, %v453
    %v456 = vperm.slane %v155, 1
    %v457 = vmul.f32 %v454, %v456
    %v458 = vmul.f32 %v455, %v456
    %v459 = vperm.slane %v155, 2
    %v460 = vadd.f32 %v457, %v459
    %v461 = vadd.f32 %v458, %v459
    %462 = vst [vmem:[#allocation10] sm:$0xff] %v460
    %463 = vst [vmem:[#allocation10 + $0x8] sm:$0xff] %v461
    // Predicated region
    $region34: #{tpu_custom_call.1} parent=1 // pred_check
      _
    $region35: #{tpu_custom_call.1} parent=1 // pred_check_branch
      %465 = sbr.rel (0) target = $region37
    $region36: #{tpu_custom_call.1} parent=1 // pred_region
      %467 = vsyncadd [#allocation4], 0
      %s468 = sshll.u32 [#allocation10], 4
      %s469 = int_to_ptr.vmem [resolvable:$true] %s468
      %s470 = sshll.u32 %s4, 4
      %s471 = int_to_ptr.hbm [resolvable:$true] %s470
      %476 = dma.vmem_to_hbm [thread:$0]  %s469, 256, %s471, [#allocation4], 128, 128, 8
    $region37: #{tpu_custom_call.1} parent=1 // pred_fallthru
      _
    // Predicated region
    $region38: #{tpu_custom_call.1} parent=1 // pred_check
      _
    $region39: #{tpu_custom_call.1} parent=1 // pred_check_branch
      %478 = sbr.rel (0) target = $region41
    $region40: #{tpu_custom_call.1} parent=1 // pred_region
      %480 = dma.done [#allocation4], 256
    $region41: #{tpu_custom_call.1} parent=1 // pred_fallthru
      _
    %481 = vsyncpa [#allocation3], 1
    %482 = vsyncpa [#allocation6], 1
    %483 = vsyncpa [#allocation9], 1
    %484 = vsyncpa [#allocation4], 1

</llo_original>
